<compile_context>
chip_gen: v6e
topology: v6e:2x2x1
jax: 0.10.0
libtpu: 0.0.40
codegen_flags: <defaults>
</compile_context>

<pallas_src>
import jax
import jax.numpy as jnp
from jax.experimental import pallas as pl
from jax.experimental.pallas import tpu as pltpu

NUM_ACTIONS = 6      # stand-in for env.action_space.n (synthetic, deterministic)

R = 4                # rows
C = 4                # cols
F = 18               # features per cell
IN_FLAT = R * C * F  # 288
EMB = 64
H1 = 2 * R * EMB     # 512 = 8*64  (fc2 input)
H2 = 64
A_PAD = 128          # lane-dense output width


def _round_up(n, m):
    return (n + m - 1) // m * m


def rowcol_kernel(x_ref, w1_ref, b1_ref, w2_ref, b2_ref, wo_ref, bo_ref, out_ref):
    # fused rowemb+colemb+concat : (TB, 288) @ (288, 512), relu
    w1 = w1_ref[...]
    x = x_ref[...].astype(w1.dtype)               # in-kernel f32->bf16 cast (VPU)
    h1 = jnp.dot(x, w1, preferred_element_type=jnp.float32)
    h1 = jnp.maximum(h1 + b1_ref[...], 0.0)       # (TB, 512) f32

    # fc2 : (TB, 512) @ (512, 64), relu
    w2 = w2_ref[...]
    h2 = jnp.dot(h1.astype(w2.dtype), w2, preferred_element_type=jnp.float32)
    h2 = jnp.maximum(h2 + b2_ref[...], 0.0)       # (TB, 64) f32

    # output head (padded to 128 lanes; pad lanes carry bias = -1e30) + softmax
    wo = wo_ref[...]
    logits = jnp.dot(h2.astype(wo.dtype), wo,
                     preferred_element_type=jnp.float32) + bo_ref[...]   # (TB, 128)
    m = jnp.max(logits, axis=-1, keepdims=True)
    e = jnp.exp(logits - m)                       # pad lanes -> 0
    denom = jnp.sum(e, axis=-1, keepdims=True)
    out_ref[...] = (e * pl.reciprocal(denom, approx=True)).astype(out_ref.dtype)


def prepare_params(params, dtype=jnp.bfloat16):
    """One-time weight layout (hoisted out of the per-step forward path).

    bf16 operands (f32 accumulation) are the default: bf16 is the full-rate
    MXU path on v5e/v6e/v7x and halves weight DMA bytes. Biases (incl. the
    -1e30 pad mask) stay f32.
    """
    Wr, br, Wc, bc, W2, b2, Wo, bo = params
    A = Wo.shape[0]

    # Block-structured combined embedding weight: maps the RAW flattened input
    # (index i*72 + j*18 + c for cell (i,j,c)) straight to the concatenated
    # [rowemb_r | colemb_r] layout, r = 0..3, 128 lanes per r.
    Wcomb = jnp.zeros((IN_FLAT, H1), jnp.float32)
    WrT, WcT = Wr.T, Wc.T                                         # (72, 64) each
    for r in range(R):
        # rowemb block: input rows of grid-row r -> lanes [r*128, r*128+64)
        Wcomb = Wcomb.at[r * 72:(r + 1) * 72, r * 128:r * 128 + 64].set(WrT)
        # colemb block: cells (i, r, c) -> lanes [r*128+64, (r+1)*128)
        for i in range(R):
            Wcomb = Wcomb.at[i * 72 + r * F:i * 72 + (r + 1) * F,
                             r * 128 + 64:(r + 1) * 128].set(WcT[i * F:(i + 1) * F])
    bcomb = jnp.tile(jnp.concatenate([br, bc]), R).reshape(1, H1)  # (1, 512) f32

    W2t = W2.T                                                     # (512, 64)
    Wot = jnp.zeros((H2, A_PAD), jnp.float32).at[:, :A].set(Wo.T)  # (64, 128)
    bot = jnp.full((1, A_PAD), -1e30, jnp.float32).at[0, :A].set(bo)

    return (Wcomb.astype(dtype), bcomb, W2t.astype(dtype),
            b2.reshape(1, -1).astype(jnp.float32), Wot.astype(dtype), bot, A)


def rowcol_forward(x, packed, *, block_b=1024, out_dtype=jnp.float32):
    """x: anything reshapeable to (B, 288) (torch's x.view(-1,4,4,18) is
    handled by the baked weight layout). Returns (B, A) softmax probs."""
    Wcomb, bcomb, W2t, b2r, Wot, bot, A = packed

    x_flat = x.reshape(-1, IN_FLAT)              # no dtype cast here (done in-kernel)
    B = x_flat.shape[0]

    # Pad only to a multiple of 8 (sublane granularity) when needed; pad rows
    # are independent garbage and are sliced off below.
    B_pad = _round_up(B, 8)
    if B_pad != B:
        x_flat = jnp.pad(x_flat, ((0, B_pad - B), (0, 0)))

    # Tile: big enough to amortize the ~0.35us per-grid-step overhead, but
    # capped at ~ceil(B/2) so the grid keeps >=2 steps and v7x's two
    # TensorCores can both be sharded onto via dimension_semantics.
    tb = min(_round_up(block_b, 8), max(8, _round_up(pl.cdiv(B_pad, 2), 8)))
    grid = pl.cdiv(B_pad, tb)                    # uneven tail block is clipped

    # VMEM budget: x/out double buffers + resident weights + f32 intermediates.
    xb = jnp.dtype(x_flat.dtype).itemsize
    wb = jnp.dtype(Wcomb.dtype).itemsize
    ob = jnp.dtype(out_dtype).itemsize
    vmem_bytes = (2 * tb * IN_FLAT * xb                       # x double buffer
                  + 2 * tb * A_PAD * ob                       # out double buffer
                  + 2 * (IN_FLAT * H1 + H1 * H2 + H2 * A_PAD) * wb   # weights
                  + tb * (H1 + H2 + 2 * A_PAD) * 4            # h1/h2/logits/exp f32
                  + (4 << 20))                                # compiler scratch headroom
    vmem_bytes = int(min(max(vmem_bytes, 16 << 20), 48 << 20))  # safe on v7x (64 MiB phys)

    out = pl.pallas_call(
        rowcol_kernel,
        out_shape=jax.ShapeDtypeStruct((B_pad, A_PAD), out_dtype),
        grid=(grid,),
        in_specs=[
            pl.BlockSpec((tb, IN_FLAT), lambda i: (i, 0)),     # x tile
            pl.BlockSpec((IN_FLAT, H1), lambda i: (0, 0)),     # combined emb W
            pl.BlockSpec((1, H1), lambda i: (0, 0)),           # combined emb b
            pl.BlockSpec((H1, H2), lambda i: (0, 0)),          # fc2 W
            pl.BlockSpec((1, H2), lambda i: (0, 0)),           # fc2 b
            pl.BlockSpec((H2, A_PAD), lambda i: (0, 0)),       # out W (padded)
            pl.BlockSpec((1, A_PAD), lambda i: (0, 0)),        # out b (padded)
        ],
        out_specs=pl.BlockSpec((tb, A_PAD), lambda i: (i, 0)),
        compiler_params=pltpu.CompilerParams(
            dimension_semantics=("parallel",),
            vmem_limit_bytes=vmem_bytes),
    )(x_flat, Wcomb, bcomb, W2t, b2r, Wot, bot)

    return out[:B, :A]


def ref_forward(x, params):
    """Pure-JAX reference matching the PyTorch RowColNet forward semantics."""
    Wr, br, Wc, bc, W2, b2, Wo, bo = params
    B = x.shape[0]
    xr = x.reshape(B, R, C, F)
    x1 = xr.reshape(B, R, C * F) @ Wr.T + br                       # (B,4,64)
    x2 = jnp.transpose(xr, (0, 2, 1, 3)).reshape(B, C, R * F) @ Wc.T + bc
    h = jax.nn.relu(jnp.concatenate([x1, x2], axis=-1).reshape(B, H1))
    h2 = jax.nn.relu(h @ W2.T + b2)
    logits = h2 @ Wo.T + bo
    return jax.nn.softmax(logits, axis=-1)


if __name__ == "__main__":
    key = jax.random.PRNGKey(0)
    ks = jax.random.split(key, 10)
    # deterministic synthetic parameters (weights ~ N(0, 0.1) as in __init__)
    Wr = 0.1 * jax.random.normal(ks[0], (EMB, C * F), jnp.float32)       # rowemb
    br = 0.1 * jax.random.normal(ks[1], (EMB,), jnp.float32)
    Wc = 0.1 * jax.random.normal(ks[2], (EMB, R * F), jnp.float32)       # colemb
    bc = 0.1 * jax.random.normal(ks[3], (EMB,), jnp.float32)
    W2 = 0.1 * jax.random.normal(ks[4], (H2, H1), jnp.float32)           # fc2
    b2 = 0.1 * jax.random.normal(ks[5], (H2,), jnp.float32)
    Wo = 0.1 * jax.random.normal(ks[6], (NUM_ACTIONS, H2), jnp.float32)  # out
    bo = 0.1 * jax.random.normal(ks[7], (NUM_ACTIONS,), jnp.float32)
    params = (Wr, br, Wc, bc, W2, b2, Wo, bo)

    x_small = jax.random.normal(ks[8], (2, IN_FLAT), jnp.float32)        # (2, 288)
    x_tail = jax.random.normal(ks[9], (37, IN_FLAT), jnp.float32)        # uneven tail

    # --- exact f32-operand path ---
    packed_f32 = prepare_params(params, dtype=jnp.float32)
    ref_s = jax.block_until_ready(ref_forward(x_small, params))
    out_s = jax.block_until_ready(rowcol_forward(x_small, packed_f32))
    assert out_s.shape == (2, NUM_ACTIONS)
    assert jnp.allclose(out_s, ref_s, atol=5e-3, rtol=5e-3), (out_s, ref_s)

    ref_t = jax.block_until_ready(ref_forward(x_tail, params))
    out_t = jax.block_until_ready(rowcol_forward(x_tail, packed_f32))
    assert out_t.shape == (37, NUM_ACTIONS)
    assert jnp.allclose(out_t, ref_t, atol=5e-3, rtol=5e-3)

    # --- default bf16-operand path (f32 accumulation) ---
    packed_bf16 = prepare_params(params)                       # bf16 default now
    out_b = jax.block_until_ready(rowcol_forward(x_tail, packed_bf16))
    assert out_b.shape == (37, NUM_ACTIONS)
    assert jnp.allclose(out_b, ref_t, atol=4e-2, rtol=0.0)

    # --- bf16 output writeback option (v6e/v5e HBM-byte saver) ---
    out_bo = jax.block_until_ready(
        rowcol_forward(x_tail, packed_bf16, out_dtype=jnp.bfloat16))
    assert out_bo.dtype == jnp.bfloat16
    assert jnp.allclose(out_bo.astype(jnp.float32), ref_t, atol=4e-2, rtol=0.0)

    print("KERNEL_OK")
</pallas_src>

<mosaic_0001>
module attributes {stable_mosaic.version = 11 : i64} {
  func.func @rowcol_kernel(%arg0: i32, %arg1: memref<8x288xf32, #tpu.memory_space<vmem>>, %arg2: memref<288x512xf32, #tpu.memory_space<vmem>>, %arg3: memref<1x512xf32, #tpu.memory_space<vmem>>, %arg4: memref<512x64xf32, #tpu.memory_space<vmem>>, %arg5: memref<1x64xf32, #tpu.memory_space<vmem>>, %arg6: memref<64x128xf32, #tpu.memory_space<vmem>>, %arg7: memref<1x128xf32, #tpu.memory_space<vmem>>, %arg8: memref<8x128xf32, #tpu.memory_space<vmem>>) attributes {dimension_semantics = [#tpu.dimension_semantics<parallel>], iteration_bounds = array<i64: 1>, scalar_prefetch = 0 : i64, scratch_operands = 0 : i64, tpu.core_type = #tpu.core_type<tc>, window_params = [{transform_indices = @transform_0, window_bounds = array<i64: 8, 288>}, {pipeline_mode = #tpu.pipeline_mode<synchronous>, transform_indices = @transform_1, window_bounds = array<i64: 288, 512>}, {pipeline_mode = #tpu.pipeline_mode<synchronous>, transform_indices = @transform_2, window_bounds = array<i64: 1, 512>}, {pipeline_mode = #tpu.pipeline_mode<synchronous>, transform_indices = @transform_3, window_bounds = array<i64: 512, 64>}, {pipeline_mode = #tpu.pipeline_mode<synchronous>, transform_indices = @transform_4, window_bounds = array<i64: 1, 64>}, {pipeline_mode = #tpu.pipeline_mode<synchronous>, transform_indices = @transform_5, window_bounds = array<i64: 64, 128>}, {pipeline_mode = #tpu.pipeline_mode<synchronous>, transform_indices = @transform_6, window_bounds = array<i64: 1, 128>}, {transform_indices = @transform_7, window_bounds = array<i64: 8, 128>}]} {
    %c0 = arith.constant 0 : index
    %c0_0 = arith.constant 0 : index
    %0 = vector.load %arg2[%c0, %c0_0] : memref<288x512xf32, #tpu.memory_space<vmem>>, vector<288x512xf32>
    %c0_1 = arith.constant 0 : index
    %c0_2 = arith.constant 0 : index
    %1 = vector.load %arg1[%c0_1, %c0_2] : memref<8x288xf32, #tpu.memory_space<vmem>>, vector<8x288xf32>
    %cst = arith.constant dense<0.000000e+00> : vector<8x512xf32>
    %2 = tpu.matmul %1, %0, %cst {dimension_numbers = #tpu.dot_dimension_numbers<[1], [0], [0], [1], [0, 0, 1, 1], [], []>} : vector<8x288xf32>, vector<288x512xf32>, vector<8x512xf32> -> vector<8x512xf32>
    %c0_3 = arith.constant 0 : index
    %c0_4 = arith.constant 0 : index
    %3 = vector.load %arg3[%c0_3, %c0_4] : memref<1x512xf32, #tpu.memory_space<vmem>>, vector<1x512xf32>
    %4 = vector.broadcast %3 : vector<1x512xf32> to vector<8x512xf32>
    %5 = arith.addf %2, %4 : vector<8x512xf32>
    %cst_5 = arith.constant 0.000000e+00 : f32
    %6 = vector.broadcast %cst_5 : f32 to vector<8x512xf32>
    %7 = arith.maximumf %5, %6 : vector<8x512xf32>
    %c0_6 = arith.constant 0 : index
    %c0_7 = arith.constant 0 : index
    %8 = vector.load %arg4[%c0_6, %c0_7] : memref<512x64xf32, #tpu.memory_space<vmem>>, vector<512x64xf32>
    %cst_8 = arith.constant dense<0.000000e+00> : vector<8x64xf32>
    %9 = tpu.matmul %7, %8, %cst_8 {dimension_numbers = #tpu.dot_dimension_numbers<[1], [0], [0], [1], [0, 0, 1, 1], [], []>} : vector<8x512xf32>, vector<512x64xf32>, vector<8x64xf32> -> vector<8x64xf32>
    %c0_9 = arith.constant 0 : index
    %c0_10 = arith.constant 0 : index
    %10 = vector.load %arg5[%c0_9, %c0_10] : memref<1x64xf32, #tpu.memory_space<vmem>>, vector<1x64xf32>
    %11 = vector.broadcast %10 : vector<1x64xf32> to vector<8x64xf32>
    %12 = arith.addf %9, %11 : vector<8x64xf32>
    %cst_11 = arith.constant 0.000000e+00 : f32
    %13 = vector.broadcast %cst_11 : f32 to vector<8x64xf32>
    %14 = arith.maximumf %12, %13 : vector<8x64xf32>
    %c0_12 = arith.constant 0 : index
    %c0_13 = arith.constant 0 : index
    %15 = vector.load %arg6[%c0_12, %c0_13] : memref<64x128xf32, #tpu.memory_space<vmem>>, vector<64x128xf32>
    %cst_14 = arith.constant dense<0.000000e+00> : vector<8x128xf32>
    %16 = tpu.matmul %14, %15, %cst_14 {dimension_numbers = #tpu.dot_dimension_numbers<[1], [0], [0], [1], [0, 0, 1, 1], [], []>} : vector<8x64xf32>, vector<64x128xf32>, vector<8x128xf32> -> vector<8x128xf32>
    %c0_15 = arith.constant 0 : index
    %c0_16 = arith.constant 0 : index
    %17 = vector.load %arg7[%c0_15, %c0_16] : memref<1x128xf32, #tpu.memory_space<vmem>>, vector<1x128xf32>
    %18 = vector.broadcast %17 : vector<1x128xf32> to vector<8x128xf32>
    %19 = arith.addf %16, %18 : vector<8x128xf32>
    %cst_17 = arith.constant dense<0xFF800000> : vector<8xf32>
    %20 = vector.multi_reduction <maximumf>, %19, %cst_17 [1] : vector<8x128xf32> to vector<8xf32>
    %21 = vector.shape_cast %20 : vector<8xf32> to vector<8x1xf32>
    %22 = vector.broadcast %21 : vector<8x1xf32> to vector<8x128xf32>
    %23 = arith.subf %19, %22 : vector<8x128xf32>
    %24 = math.exp %23 : vector<8x128xf32>
    %cst_18 = arith.constant dense<0.000000e+00> : vector<8xf32>
    %25 = vector.multi_reduction <add>, %24, %cst_18 [1] : vector<8x128xf32> to vector<8xf32>
    %26 = vector.shape_cast %25 : vector<8xf32> to vector<8x1xf32>
    %27 = tpu.reciprocal %26 {approx = true} : vector<8x1xf32> -> vector<8x1xf32>
    %28 = vector.broadcast %27 : vector<8x1xf32> to vector<8x128xf32>
    %29 = arith.mulf %24, %28 : vector<8x128xf32>
    %c0_19 = arith.constant 0 : index
    %c0_20 = arith.constant 0 : index
    %30 = vector.load %arg8[%c0_19, %c0_20] : memref<8x128xf32, #tpu.memory_space<vmem>>, vector<8x128xf32>
    tpu.vector_store %arg8[%c0_19, %c0_20], %29 {strides = array<i32>} : memref<8x128xf32, #tpu.memory_space<vmem>>, vector<8x128xf32>,
    return
  }
  func.func @transform_0(%arg0: i32) -> (i32, i32) {
    %c0_i32 = arith.constant 0 : i32
    %c0_i32_0 = arith.constant 0 : i32
    return %arg0, %c0_i32 : i32, i32
  }
  func.func @transform_1(%arg0: i32) -> (i32, i32) {
    %c0_i32 = arith.constant 0 : i32
    %c0_i32_0 = arith.constant 0 : i32
    %c0_i32_1 = arith.constant 0 : i32
    return %c0_i32, %c0_i32_0 : i32, i32
  }
  func.func @transform_2(%arg0: i32) -> (i32, i32) {
    %c0_i32 = arith.constant 0 : i32
    %c0_i32_0 = arith.constant 0 : i32
    %c0_i32_1 = arith.constant 0 : i32
    return %c0_i32, %c0_i32_0 : i32, i32
  }
  func.func @transform_3(%arg0: i32) -> (i32, i32) {
    %c0_i32 = arith.constant 0 : i32
    %c0_i32_0 = arith.constant 0 : i32
    %c0_i32_1 = arith.constant 0 : i32
    return %c0_i32, %c0_i32_0 : i32, i32
  }
  func.func @transform_4(%arg0: i32) -> (i32, i32) {
    %c0_i32 = arith.constant 0 : i32
    %c0_i32_0 = arith.constant 0 : i32
    %c0_i32_1 = arith.constant 0 : i32
    return %c0_i32, %c0_i32_0 : i32, i32
  }
  func.func @transform_5(%arg0: i32) -> (i32, i32) {
    %c0_i32 = arith.constant 0 : i32
    %c0_i32_0 = arith.constant 0 : i32
    %c0_i32_1 = arith.constant 0 : i32
    return %c0_i32, %c0_i32_0 : i32, i32
  }
  func.func @transform_6(%arg0: i32) -> (i32, i32) {
    %c0_i32 = arith.constant 0 : i32
    %c0_i32_0 = arith.constant 0 : i32
    %c0_i32_1 = arith.constant 0 : i32
    return %c0_i32, %c0_i32_0 : i32, i32
  }
  func.func @transform_7(%arg0: i32) -> (i32, i32) {
    %c0_i32 = arith.constant 0 : i32
    %c0_i32_0 = arith.constant 0 : i32
    return %arg0, %c0_i32 : i32, i32
  }
}

</mosaic_0001>

<llo_original>
// kernel: tpu_custom_call.1
$region0: #{tpu_custom_call.1}
  #allocation0 [shape = 'u32[]', space=smem, size = 0x4, offset = 0x4, fixed_abs, tag = 'smem constant byte address 0x4 - core index']
  #allocation1 [shape = 'u32[144,128]{1,0:T(1,128)}', space=vmem, size = 0x12000, scoped, tag = 'internal scratch']
  %s0 = inlined_call_operand.vmem [shape: f32[8,288], index: 0, kind: input, shape index: {}]
  %s1 = inlined_call_operand.hbm [shape: f32[288,512], index: 1, kind: input, shape index: {}]
  %s2 = inlined_call_operand.vmem [shape: f32[1,512], index: 2, kind: input, shape index: {}]
  %s3 = inlined_call_operand.vmem [shape: f32[512,64], index: 3, kind: input, shape index: {}]
  %s4 = inlined_call_operand.vmem [shape: f32[1,64], index: 4, kind: input, shape index: {}]
  %s5 = inlined_call_operand.vmem [shape: f32[64,128], index: 5, kind: input, shape index: {}]
  %s6 = inlined_call_operand.vmem [shape: f32[1,128], index: 6, kind: input, shape index: {}]
  %s7 = inlined_call_operand.hbm [shape: f32[8,128], index: 7, kind: output, shape index: {}]
  %s8 = sld [smem:[#allocation0]]
  $region42: #{tpu_custom_call.1} parent=0
    _
  %s10 = ssub.s32 1, %s8
  %s11 = scalar_select 0, %s10, %s8
  $region1: #{tpu_custom_call.1} parent=0
    #allocation2 [shape = 'u8[589824]{0}', space=vmem, size = 0x90000, scoped, tag = 'input window, operand 1, single buffered']
    #allocation3 [shape = 's32[1]{0}', space=sflag, size = 0x4, scoped, tag = 'scoped memory for tpu_custom_call.1']
    #allocation4 [shape = 's32[1]{0}', space=sflag, size = 0x4, scoped, tag = 'scoped memory for tpu_custom_call.1']
    #allocation5 [shape = 'u8[4096]{0}', space=vmem, size = 0x1000, scoped, tag = 'output window, operand 0, single buffered']
    %12 = vsyncpa [#allocation3], 0
    %13 = vsyncpa [#allocation4], 0
    // Predicated region
    $region2: #{tpu_custom_call.1} parent=1 // pred_check
      _
    $region3: #{tpu_custom_call.1} parent=1 // pred_check_branch
      %15 = sbr.rel (0) target = $region5
    $region4: #{tpu_custom_call.1} parent=1 // pred_region
      _
    $region5: #{tpu_custom_call.1} parent=1 // pred_fallthru
      _
    // Predicated region
    $region6: #{tpu_custom_call.1} parent=1 // pred_check
      _
    $region7: #{tpu_custom_call.1} parent=1 // pred_check_branch
      %17 = sbr.rel (0) target = $region9
    $region8: #{tpu_custom_call.1} parent=1 // pred_region
      %s19 = ssub.s32 18432, 18432
      %20 = vsyncadd [#allocation3], %s19
      %s21 = sshll.u32 [#allocation2], 4
      %s22 = int_to_ptr.vmem [resolvable:$true] %s21
      %27 = dma.hbm_to_vmem [thread:$0]  %s1, 18432, %s22, [#allocation3], 512, 512, 32
    $region9: #{tpu_custom_call.1} parent=1 // pred_fallthru
      _
    // Predicated region
    $region10: #{tpu_custom_call.1} parent=1 // pred_check
      _
    $region11: #{tpu_custom_call.1} parent=1 // pred_check_branch
      %29 = sbr.rel (0) target = $region13
    $region12: #{tpu_custom_call.1} parent=1 // pred_region
      _
    $region13: #{tpu_custom_call.1} parent=1 // pred_fallthru
      _
    // Predicated region
    $region14: #{tpu_custom_call.1} parent=1 // pred_check
      _
    $region15: #{tpu_custom_call.1} parent=1 // pred_check_branch
      %31 = sbr.rel (0) target = $region17
    $region16: #{tpu_custom_call.1} parent=1 // pred_region
      _
    $region17: #{tpu_custom_call.1} parent=1 // pred_fallthru
      _
    // Predicated region
    $region18: #{tpu_custom_call.1} parent=1 // pred_check
      _
    $region19: #{tpu_custom_call.1} parent=1 // pred_check_branch
      %33 = sbr.rel (0) target = $region21
    $region20: #{tpu_custom_call.1} parent=1 // pred_region
      _
    $region21: #{tpu_custom_call.1} parent=1 // pred_fallthru
      _
    // Predicated region
    $region22: #{tpu_custom_call.1} parent=1 // pred_check
      _
    $region23: #{tpu_custom_call.1} parent=1 // pred_check_branch
      %35 = sbr.rel (0) target = $region25
    $region24: #{tpu_custom_call.1} parent=1 // pred_region
      _
    $region25: #{tpu_custom_call.1} parent=1 // pred_fallthru
      _
    // Predicated region
    $region26: #{tpu_custom_call.1} parent=1 // pred_check
      _
    $region27: #{tpu_custom_call.1} parent=1 // pred_check_branch
      %37 = sbr.rel (0) target = $region29
    $region28: #{tpu_custom_call.1} parent=1 // pred_region
      _
    $region29: #{tpu_custom_call.1} parent=1 // pred_fallthru
      _
    // Predicated region
    $region30: #{tpu_custom_call.1} parent=1 // pred_check
      _
    $region31: #{tpu_custom_call.1} parent=1 // pred_check_branch
      %39 = sbr.rel (0) target = $region33
    $region32: #{tpu_custom_call.1} parent=1 // pred_region
      %40 = dma.done [#allocation3], 18432
    $region33: #{tpu_custom_call.1} parent=1 // pred_fallthru
      _
    %v41 = vld [vmem:[#allocation2] sm:$0xff]
    %v42 = vld [vmem:[#allocation2 + $0x8] sm:$0xff]
    %v43 = vld [vmem:[#allocation2 + $0x10] sm:$0xff]
    %v44 = vld [vmem:[#allocation2 + $0x18] sm:$0xff]
    %v45 = vld [vmem:[#allocation2 + $0x20] sm:$0xff]
    %v46 = vld [vmem:[#allocation2 + $0x28] sm:$0xff]
    %v47 = vld [vmem:[#allocation2 + $0x30] sm:$0xff]
    %v48 = vld [vmem:[#allocation2 + $0x38] sm:$0xff]
    %v49 = vld [vmem:[#allocation2 + $0x40] sm:$0xff]
    %v50 = vld [vmem:[#allocation2 + $0x48] sm:$0xff]
    %v51 = vld [vmem:[#allocation2 + $0x50] sm:$0xff]
    %v52 = vld [vmem:[#allocation2 + $0x58] sm:$0xff]
    %v53 = vld [vmem:[#allocation2 + $0x60] sm:$0xff]
    %v54 = vld [vmem:[#allocation2 + $0x68] sm:$0xff]
    %v55 = vld [vmem:[#allocation2 + $0x70] sm:$0xff]
    %v56 = vld [vmem:[#allocation2 + $0x78] sm:$0xff]
    %v57 = vld [vmem:[#allocation2 + $0x80] sm:$0xff]
    %v58 = vld [vmem:[#allocation2 + $0x88] sm:$0xff]
    %v59 = vld [vmem:[#allocation2 + $0x90] sm:$0xff]
    %v60 = vld [vmem:[#allocation2 + $0x98] sm:$0xff]
    %v61 = vld [vmem:[#allocation2 + $0xa0] sm:$0xff]
    %v62 = vld [vmem:[#allocation2 + $0xa8] sm:$0xff]
    %v63 = vld [vmem:[#allocation2 + $0xb0] sm:$0xff]
    %v64 = vld [vmem:[#allocation2 + $0xb8] sm:$0xff]
    %v65 = vld [vmem:[#allocation2 + $0xc0] sm:$0xff]
    %v66 = vld [vmem:[#allocation2 + $0xc8] sm:$0xff]
    %v67 = vld [vmem:[#allocation2 + $0xd0] sm:$0xff]
    %v68 = vld [vmem:[#allocation2 + $0xd8] sm:$0xff]
    %v69 = vld [vmem:[#allocation2 + $0xe0] sm:$0xff]
    %v70 = vld [vmem:[#allocation2 + $0xe8] sm:$0xff]
    %v71 = vld [vmem:[#allocation2 + $0xf0] sm:$0xff]
    %v72 = vld [vmem:[#allocation2 + $0xf8] sm:$0xff]
    %v73 = vld [vmem:[#allocation2 + $0x100] sm:$0xff]
    %v74 = vld [vmem:[#allocation2 + $0x108] sm:$0xff]
    %v75 = vld [vmem:[#allocation2 + $0x110] sm:$0xff]
    %v76 = vld [vmem:[#allocation2 + $0x118] sm:$0xff]
    %v77 = vld [vmem:[#allocation2 + $0x120] sm:$0xff]
    %v78 = vld [vmem:[#allocation2 + $0x128] sm:$0xff]
    %v79 = vld [vmem:[#allocation2 + $0x130] sm:$0xff]
    %v80 = vld [vmem:[#allocation2 + $0x138] sm:$0xff]
    %v81 = vld [vmem:[#allocation2 + $0x140] sm:$0xff]
    %v82 = vld [vmem:[#allocation2 + $0x148] sm:$0xff]
    %v83 = vld [vmem:[#allocation2 + $0x150] sm:$0xff]
    %v84 = vld [vmem:[#allocation2 + $0x158] sm:$0xff]
    %v85 = vld [vmem:[#allocation2 + $0x160] sm:$0xff]
    %v86 = vld [vmem:[#allocation2 + $0x168] sm:$0xff]
    %v87 = vld [vmem:[#allocation2 + $0x170] sm:$0xff]
    %v88 = vld [vmem:[#allocation2 + $0x178] sm:$0xff]
    %v89 = vld [vmem:[#allocation2 + $0x180] sm:$0xff]
    %v90 = vld [vmem:[#allocation2 + $0x188] sm:$0xff]
    %v91 = vld [vmem:[#allocation2 + $0x190] sm:$0xff]
    %v92 = vld [vmem:[#allocation2 + $0x198] sm:$0xff]
    %v93 = vld [vmem:[#allocation2 + $0x1a0] sm:$0xff]
    %v94 = vld [vmem:[#allocation2 + $0x1a8] sm:$0xff]
    %v95 = vld [vmem:[#allocation2 + $0x1b0] sm:$0xff]
    %v96 = vld [vmem:[#allocation2 + $0x1b8] sm:$0xff]
    %v97 = vld [vmem:[#allocation2 + $0x1c0] sm:$0xff]
    %v98 = vld [vmem:[#allocation2 + $0x1c8] sm:$0xff]
    %v99 = vld [vmem:[#allocation2 + $0x1d0] sm:$0xff]
    %v100 = vld [vmem:[#allocation2 + $0x1d8] sm:$0xff]
    %v101 = vld [vmem:[#allocation2 + $0x1e0] sm:$0xff]
    %v102 = vld [vmem:[#allocation2 + $0x1e8] sm:$0xff]
    %v103 = vld [vmem:[#allocation2 + $0x1f0] sm:$0xff]
    %v104 = vld [vmem:[#allocation2 + $0x1f8] sm:$0xff]
    %v105 = vld [vmem:[#allocation2 + $0x200] sm:$0xff]
    %v106 = vld [vmem:[#allocation2 + $0x208] sm:$0xff]
    %v107 = vld [vmem:[#allocation2 + $0x210] sm:$0xff]
    %v108 = vld [vmem:[#allocation2 + $0x218] sm:$0xff]
    %v109 = vld [vmem:[#allocation2 + $0x220] sm:$0xff]
    %v110 = vld [vmem:[#allocation2 + $0x228] sm:$0xff]
    %v111 = vld [vmem:[#allocation2 + $0x230] sm:$0xff]
    %v112 = vld [vmem:[#allocation2 + $0x238] sm:$0xff]
    %v113 = vld [vmem:[#allocation2 + $0x240] sm:$0xff]
    %v114 = vld [vmem:[#allocation2 + $0x248] sm:$0xff]
    %v115 = vld [vmem:[#allocation2 + $0x250] sm:$0xff]
    %v116 = vld [vmem:[#allocation2 + $0x258] sm:$0xff]
    %v117 = vld [vmem:[#allocation2 + $0x260] sm:$0xff]
    %v118 = vld [vmem:[#allocation2 + $0x268] sm:$0xff]
    %v119 = vld [vmem:[#allocation2 + $0x270] sm:$0xff]
    %v120 = vld [vmem:[#allocation2 + $0x278] sm:$0xff]
    %v121 = vld [vmem:[#allocation2 + $0x280] sm:$0xff]
    %v122 = vld [vmem:[#allocation2 + $0x288] sm:$0xff]
    %v123 = vld [vmem:[#allocation2 + $0x290] sm:$0xff]
    %v124 = vld [vmem:[#allocation2 + $0x298] sm:$0xff]
    %v125 = vld [vmem:[#allocation2 + $0x2a0] sm:$0xff]
    %v126 = vld [vmem:[#allocation2 + $0x2a8] sm:$0xff]
    %v127 = vld [vmem:[#allocation2 + $0x2b0] sm:$0xff]
    %v128 = vld [vmem:[#allocation2 + $0x2b8] sm:$0xff]
    %v129 = vld [vmem:[#allocation2 + $0x2c0] sm:$0xff]
    %v130 = vld [vmem:[#allocation2 + $0x2c8] sm:$0xff]
    %v131 = vld [vmem:[#allocation2 + $0x2d0] sm:$0xff]
    %v132 = vld [vmem:[#allocation2 + $0x2d8] sm:$0xff]
    %v133 = vld [vmem:[#allocation2 + $0x2e0] sm:$0xff]
    %v134 = vld [vmem:[#allocation2 + $0x2e8] sm:$0xff]
    %v135 = vld [vmem:[#allocation2 + $0x2f0] sm:$0xff]
    %v136 = vld [vmem:[#allocation2 + $0x2f8] sm:$0xff]
    %v137 = vld [vmem:[#allocation2 + $0x300] sm:$0xff]
    %v138 = vld [vmem:[#allocation2 + $0x308] sm:$0xff]
    %v139 = vld [vmem:[#allocation2 + $0x310] sm:$0xff]
    %v140 = vld [vmem:[#allocation2 + $0x318] sm:$0xff]
    %v141 = vld [vmem:[#allocation2 + $0x320] sm:$0xff]
    %v142 = vld [vmem:[#allocation2 + $0x328] sm:$0xff]
    %v143 = vld [vmem:[#allocation2 + $0x330] sm:$0xff]
    %v144 = vld [vmem:[#allocation2 + $0x338] sm:$0xff]
    %v145 = vld [vmem:[#allocation2 + $0x340] sm:$0xff]
    %v146 = vld [vmem:[#allocation2 + $0x348] sm:$0xff]
    %v147 = vld [vmem:[#allocation2 + $0x350] sm:$0xff]
    %v148 = vld [vmem:[#allocation2 + $0x358] sm:$0xff]
    %v149 = vld [vmem:[#allocation2 + $0x360] sm:$0xff]
    %v150 = vld [vmem:[#allocation2 + $0x368] sm:$0xff]
    %v151 = vld [vmem:[#allocation2 + $0x370] sm:$0xff]
    %v152 = vld [vmem:[#allocation2 + $0x378] sm:$0xff]
    %v153 = vld [vmem:[#allocation2 + $0x380] sm:$0xff]
    %v154 = vld [vmem:[#allocation2 + $0x388] sm:$0xff]
    %v155 = vld [vmem:[#allocation2 + $0x390] sm:$0xff]
    %v156 = vld [vmem:[#allocation2 + $0x398] sm:$0xff]
    %v157 = vld [vmem:[#allocation2 + $0x3a0] sm:$0xff]
    %v158 = vld [vmem:[#allocation2 + $0x3a8] sm:$0xff]
    %v159 = vld [vmem:[#allocation2 + $0x3b0] sm:$0xff]
    %v160 = vld [vmem:[#allocation2 + $0x3b8] sm:$0xff]
    %v161 = vld [vmem:[#allocation2 + $0x3c0] sm:$0xff]
    %v162 = vld [vmem:[#allocation2 + $0x3c8] sm:$0xff]
    %v163 = vld [vmem:[#allocation2 + $0x3d0] sm:$0xff]
    %v164 = vld [vmem:[#allocation2 + $0x3d8] sm:$0xff]
    %v165 = vld [vmem:[#allocation2 + $0x3e0] sm:$0xff]
    %v166 = vld [vmem:[#allocation2 + $0x3e8] sm:$0xff]
    %v167 = vld [vmem:[#allocation2 + $0x3f0] sm:$0xff]
    %v168 = vld [vmem:[#allocation2 + $0x3f8] sm:$0xff]
    %v169 = vld [vmem:[#allocation2 + $0x400] sm:$0xff]
    %v170 = vld [vmem:[#allocation2 + $0x408] sm:$0xff]
    %v171 = vld [vmem:[#allocation2 + $0x410] sm:$0xff]
    %v172 = vld [vmem:[#allocation2 + $0x418] sm:$0xff]
    %v173 = vld [vmem:[#allocation2 + $0x420] sm:$0xff]
    %v174 = vld [vmem:[#allocation2 + $0x428] sm:$0xff]
    %v175 = vld [vmem:[#allocation2 + $0x430] sm:$0xff]
    %v176 = vld [vmem:[#allocation2 + $0x438] sm:$0xff]
    %v177 = vld [vmem:[#allocation2 + $0x440] sm:$0xff]
    %v178 = vld [vmem:[#allocation2 + $0x448] sm:$0xff]
    %v179 = vld [vmem:[#allocation2 + $0x450] sm:$0xff]
    %v180 = vld [vmem:[#allocation2 + $0x458] sm:$0xff]
    %v181 = vld [vmem:[#allocation2 + $0x460] sm:$0xff]
    %v182 = vld [vmem:[#allocation2 + $0x468] sm:$0xff]
    %v183 = vld [vmem:[#allocation2 + $0x470] sm:$0xff]
    %v184 = vld [vmem:[#allocation2 + $0x478] sm:$0xff]
    %v185 = vld [vmem:[%s0] sm:$0xff]
    %v186 = vld [vmem:[%s0 + $0x8] sm:$0xff]
    %v187 = vld [vmem:[%s0 + $0x10] sm:$0xff]
    %v188 = vld [vmem:[%s2] sm:$0xf]
    %v190 = vlaneseq
    %v191 = vshrl.u32 %v190, 7
    %v192 = vsub.s32 0, %v191
    %v193 = vrot.slane %v188, %v192
    %v194 = vlaneseq
    %v195 = vshrl.u32 %v194, 7
    %v196 = vsub.s32 1, %v195
    %v197 = vrot.slane %v188, %v196
    %v198 = vlaneseq
    %v199 = vshrl.u32 %v198, 7
    %v200 = vsub.s32 2, %v199
    %v201 = vrot.slane %v188, %v200
    %v202 = vlaneseq
    %v203 = vshrl.u32 %v202, 7
    %v204 = vsub.s32 3, %v203
    %v205 = vrot.slane %v188, %v204
    %vm210 = vcmask 261120
    %v212 = vsel %vm210, %v187, 0
    %214 = vmatprep.subr.mxu0 %v102
    %215 = vmatpush1.msra.mxu0 %v101
    %216 = vmatprep.subr.mxu0 %v98
    %217 = vmatpush1.msra.mxu0 %v97
    %218 = vmatprep.subr.mxu0 %v94
    %219 = vmatpush1.msra.mxu0 %v93
    %220 = vmatprep.subr.mxu0 %v90
    %221 = vmatpush1.msra.mxu0 %v89
    %222 = vmatprep.subr.mxu0 %v86
    %223 = vmatpush1.msra.mxu0 %v85
    %224 = vmatprep.subr.mxu0 %v82
    %225 = vmatpush1.msra.mxu0 %v81
    %226 = vmatprep.subr.mxu0 %v78
    %227 = vmatpush1.msra.mxu0 %v77
    %228 = vmatprep.subr.mxu0 %v74
    %229 = vmatpush1.msra.mxu0 %v73
    %230 = vmatprep.subr.mxu0 %v70
    %231 = vmatpush1.msra.mxu0 %v69
    %232 = vmatprep.subr.mxu0 %v66
    %233 = vmatpush1.msra.mxu0 %v65
    %234 = vmatprep.subr.mxu0 %v62
    %235 = vmatpush1.msra.mxu0 %v61
    %236 = vmatprep.subr.mxu0 %v58
    %237 = vmatpush1.msra.mxu0 %v57
    %238 = vmatprep.subr.mxu0 %v54
    %239 = vmatpush1.msra.mxu0 %v53
    %240 = vmatprep.subr.mxu0 %v50
    %241 = vmatpush1.msra.mxu0 %v49
    %242 = vmatprep.subr.mxu0 %v46
    %243 = vmatpush1.msra.mxu0 %v45
    %244 = vmatprep.subr.mxu0 %v42
    %245 = vmatpush1.msra.mxu0 %v41
    %246 = vmatprep.subr.mxu0 %v166
    %247 = vmatpush2.msra.mxu0 %v165
    %248 = vmatprep.subr.mxu0 %v162
    %249 = vmatpush2.msra.mxu0 %v161
    %250 = vmatprep.subr.mxu0 %v158
    %251 = vmatpush2.msra.mxu0 %v157
    %252 = vmatprep.subr.mxu0 %v154
    %253 = vmatpush2.msra.mxu0 %v153
    %254 = vmatprep.subr.mxu0 %v150
    %255 = vmatpush2.msra.mxu0 %v149
    %256 = vmatprep.subr.mxu0 %v146
    %257 = vmatpush2.msra.mxu0 %v145
    %258 = vmatprep.subr.mxu0 %v142
    %259 = vmatpush2.msra.mxu0 %v141
    %260 = vmatprep.subr.mxu0 %v138
    %261 = vmatpush2.msra.mxu0 %v137
    %262 = vmatprep.subr.mxu0 %v134
    %263 = vmatpush2.msra.mxu0 %v133
    %264 = vmatprep.subr.mxu0 %v130
    %265 = vmatpush2.msra.mxu0 %v129
    %266 = vmatprep.subr.mxu0 %v126
    %267 = vmatpush2.msra.mxu0 %v125
    %268 = vmatprep.subr.mxu0 %v122
    %269 = vmatpush2.msra.mxu0 %v121
    %270 = vmatprep.subr.mxu0 %v118
    %271 = vmatpush2.msra.mxu0 %v117
    %272 = vmatprep.subr.mxu0 %v114
    %273 = vmatpush2.msra.mxu0 %v113
    %274 = vmatprep.subr.mxu0 %v110
    %275 = vmatpush2.msra.mxu0 %v109
    %276 = vmatprep.subr.mxu0 %v106
    %277 = vmatpush2.msra.mxu0 %v105
    %278 = vmatprep.mubr.f32.mxu0 %v186
    %279 = vmatmul.mubr.f32.gmra.mxu0 %v185
    %v280 = vpop.f32.mrf.mxu0
    %v281 = vadd.f32 %v193, %v280
    %v282 = vpop.f32.mrf.mxu0
    %v283 = vadd.f32 %v197, %v282
    %284 = vdwg.mxu0
    %285 = vmatprep.subr.mxu0 0.0
    %286 = vmatpush1.msra.mxu0 0.0
    %287 = vmatprep.subr.mxu0 0.0
    %288 = vmatpush1.msra.mxu0 0.0
    %289 = vmatprep.subr.mxu0 0.0
    %290 = vmatpush1.msra.mxu0 0.0
    %291 = vmatprep.subr.mxu0 0.0
    %292 = vmatpush1.msra.mxu0 0.0
    %293 = vmatprep.subr.mxu0 0.0
    %294 = vmatpush1.msra.mxu0 0.0
    %295 = vmatprep.subr.mxu0 0.0
    %296 = vmatpush1.msra.mxu0 0.0
    %297 = vmatprep.subr.mxu0 0.0
    %298 = vmatpush1.msra.mxu0 0.0
    %299 = vmatprep.subr.mxu0 0.0
    %300 = vmatpush1.msra.mxu0 0.0
    %301 = vmatprep.subr.mxu0 0.0
    %302 = vmatpush1.msra.mxu0 0.0
    %303 = vmatprep.subr.mxu0 0.0
    %304 = vmatpush1.msra.mxu0 0.0
    %305 = vmatprep.subr.mxu0 0.0
    %306 = vmatpush1.msra.mxu0 0.0
    %307 = vmatprep.subr.mxu0 0.0
    %308 = vmatpush1.msra.mxu0 0.0
    %309 = vmatprep.subr.mxu0 %v182
    %310 = vmatpush1.msra.mxu0 %v181
    %311 = vmatprep.subr.mxu0 %v178
    %312 = vmatpush1.msra.mxu0 %v177
    %313 = vmatprep.subr.mxu0 %v174
    %314 = vmatpush1.msra.mxu0 %v173
    %315 = vmatprep.subr.mxu0 %v170
    %316 = vmatpush1.msra.mxu0 %v169
    %317 = vmatprep.subr.mxu0 0.0
    %318 = vmatpush2.msra.mxu0 0.0
    %319 = vmatprep.subr.mxu0 0.0
    %320 = vmatpush2.msra.mxu0 0.0
    %321 = vmatprep.subr.mxu0 0.0
    %322 = vmatpush2.msra.mxu0 0.0
    %323 = vmatprep.subr.mxu0 0.0
    %324 = vmatpush2.msra.mxu0 0.0
    %325 = vmatprep.subr.mxu0 0.0
    %326 = vmatpush2.msra.mxu0 0.0
    %327 = vmatprep.subr.mxu0 0.0
    %328 = vmatpush2.msra.mxu0 0.0
    %329 = vmatprep.subr.mxu0 0.0
    %330 = vmatpush2.msra.mxu0 0.0
    %331 = vmatprep.subr.mxu0 0.0
    %332 = vmatpush2.msra.mxu0 0.0
    %333 = vmatprep.subr.mxu0 0.0
    %334 = vmatpush2.msra.mxu0 0.0
    %335 = vmatprep.subr.mxu0 0.0
    %336 = vmatpush2.msra.mxu0 0.0
    %337 = vmatprep.subr.mxu0 0.0
    %338 = vmatpush2.msra.mxu0 0.0
    %339 = vmatprep.subr.mxu0 0.0
    %340 = vmatpush2.msra.mxu0 0.0
    %341 = vmatprep.subr.mxu0 0.0
    %342 = vmatpush2.msra.mxu0 0.0
    %343 = vmatprep.subr.mxu0 0.0
    %344 = vmatpush2.msra.mxu0 0.0
    %345 = vmatprep.subr.mxu0 0.0
    %346 = vmatpush2.msra.mxu0 0.0
    %347 = vmatprep.subr.mxu0 0.0
    %348 = vmatpush2.msra.mxu0 0.0
    %349 = vmatprep.mubr.f32.mxu0 0.0
    %350 = vmatmul.mubr.f32.gmra.mxu0 %v212
    %v351 = vpop.f32.mrf.mxu0
    %v352 = vadd.f32 %v281, %v351
    %v353 = vpop.f32.mrf.mxu0
    %v354 = vadd.f32 %v283, %v353
    %355 = vdwg.mxu0
    %356 = vmatprep.subr.mxu0 %v104
    %357 = vmatpush1.msra.mxu0 %v103
    %358 = vmatprep.subr.mxu0 %v100
    %359 = vmatpush1.msra.mxu0 %v99
    %360 = vmatprep.subr.mxu0 %v96
    %361 = vmatpush1.msra.mxu0 %v95
    %362 = vmatprep.subr.mxu0 %v92
    %363 = vmatpush1.msra.mxu0 %v91
    %364 = vmatprep.subr.mxu0 %v88
    %365 = vmatpush1.msra.mxu0 %v87
    %366 = vmatprep.subr.mxu0 %v84
    %367 = vmatpush1.msra.mxu0 %v83
    %368 = vmatprep.subr.mxu0 %v80
    %369 = vmatpush1.msra.mxu0 %v79
    %370 = vmatprep.subr.mxu0 %v76
    %371 = vmatpush1.msra.mxu0 %v75
    %372 = vmatprep.subr.mxu0 %v72
    %373 = vmatpush1.msra.mxu0 %v71
    %374 = vmatprep.subr.mxu0 %v68
    %375 = vmatpush1.msra.mxu0 %v67
    %376 = vmatprep.subr.mxu0 %v64
    %377 = vmatpush1.msra.mxu0 %v63
    %378 = vmatprep.subr.mxu0 %v60
    %379 = vmatpush1.msra.mxu0 %v59
    %380 = vmatprep.subr.mxu0 %v56
    %381 = vmatpush1.msra.mxu0 %v55
    %382 = vmatprep.subr.mxu0 %v52
    %383 = vmatpush1.msra.mxu0 %v51
    %384 = vmatprep.subr.mxu0 %v48
    %385 = vmatpush1.msra.mxu0 %v47
    %386 = vmatprep.subr.mxu0 %v44
    %387 = vmatpush1.msra.mxu0 %v43
    %388 = vmatprep.subr.mxu0 %v168
    %389 = vmatpush2.msra.mxu0 %v167
    %390 = vmatprep.subr.mxu0 %v164
    %391 = vmatpush2.msra.mxu0 %v163
    %392 = vmatprep.subr.mxu0 %v160
    %393 = vmatpush2.msra.mxu0 %v159
    %394 = vmatprep.subr.mxu0 %v156
    %395 = vmatpush2.msra.mxu0 %v155
    %396 = vmatprep.subr.mxu0 %v152
    %397 = vmatpush2.msra.mxu0 %v151
    %398 = vmatprep.subr.mxu0 %v148
    %399 = vmatpush2.msra.mxu0 %v147
    %400 = vmatprep.subr.mxu0 %v144
    %401 = vmatpush2.msra.mxu0 %v143
    %402 = vmatprep.subr.mxu0 %v140
    %403 = vmatpush2.msra.mxu0 %v139
    %404 = vmatprep.subr.mxu0 %v136
    %405 = vmatpush2.msra.mxu0 %v135
    %406 = vmatprep.subr.mxu0 %v132
    %407 = vmatpush2.msra.mxu0 %v131
    %408 = vmatprep.subr.mxu0 %v128
    %409 = vmatpush2.msra.mxu0 %v127
    %410 = vmatprep.subr.mxu0 %v124
    %411 = vmatpush2.msra.mxu0 %v123
    %412 = vmatprep.subr.mxu0 %v120
    %413 = vmatpush2.msra.mxu0 %v119
    %414 = vmatprep.subr.mxu0 %v116
    %415 = vmatpush2.msra.mxu0 %v115
    %416 = vmatprep.subr.mxu0 %v112
    %417 = vmatpush2.msra.mxu0 %v111
    %418 = vmatprep.subr.mxu0 %v108
    %419 = vmatpush2.msra.mxu0 %v107
    %420 = vmatprep.mubr.f32.mxu0 %v186
    %421 = vmatmul.mubr.f32.gmra.mxu0 %v185
    %v422 = vpop.f32.mrf.mxu0
    %v423 = vadd.f32 %v201, %v422
    %v424 = vpop.f32.mrf.mxu0
    %v425 = vadd.f32 %v205, %v424
    %426 = vdwg.mxu0
    %427 = vmatprep.subr.mxu0 0.0
    %428 = vmatpush1.msra.mxu0 0.0
    %429 = vmatprep.subr.mxu0 0.0
    %430 = vmatpush1.msra.mxu0 0.0
    %431 = vmatprep.subr.mxu0 0.0
    %432 = vmatpush1.msra.mxu0 0.0
    %433 = vmatprep.subr.mxu0 0.0
    %434 = vmatpush1.msra.mxu0 0.0
    %435 = vmatprep.subr.mxu0 0.0
    %436 = vmatpush1.msra.mxu0 0.0
    %437 = vmatprep.subr.mxu0 0.0
    %438 = vmatpush1.msra.mxu0 0.0
    %439 = vmatprep.subr.mxu0 0.0
    %440 = vmatpush1.msra.mxu0 0.0
    %441 = vmatprep.subr.mxu0 0.0
    %442 = vmatpush1.msra.mxu0 0.0
    %443 = vmatprep.subr.mxu0 0.0
    %444 = vmatpush1.msra.mxu0 0.0
    %445 = vmatprep.subr.mxu0 0.0
    %446 = vmatpush1.msra.mxu0 0.0
    %447 = vmatprep.subr.mxu0 0.0
    %448 = vmatpush1.msra.mxu0 0.0
    %449 = vmatprep.subr.mxu0 0.0
    %450 = vmatpush1.msra.mxu0 0.0
    %451 = vmatprep.subr.mxu0 %v184
    %452 = vmatpush1.msra.mxu0 %v183
    %453 = vmatprep.subr.mxu0 %v180
    %454 = vmatpush1.msra.mxu0 %v179
    %455 = vmatprep.subr.mxu0 %v176
    %456 = vmatpush1.msra.mxu0 %v175
    %457 = vmatprep.subr.mxu0 %v172
    %458 = vmatpush1.msra.mxu0 %v171
    %459 = vmatprep.subr.mxu0 0.0
    %460 = vmatpush2.msra.mxu0 0.0
    %461 = vmatprep.subr.mxu0 0.0
    %462 = vmatpush2.msra.mxu0 0.0
    %463 = vmatprep.subr.mxu0 0.0
    %464 = vmatpush2.msra.mxu0 0.0
    %465 = vmatprep.subr.mxu0 0.0
    %466 = vmatpush2.msra.mxu0 0.0
    %467 = vmatprep.subr.mxu0 0.0
    %468 = vmatpush2.msra.mxu0 0.0
    %469 = vmatprep.subr.mxu0 0.0
    %470 = vmatpush2.msra.mxu0 0.0
    %471 = vmatprep.subr.mxu0 0.0
    %472 = vmatpush2.msra.mxu0 0.0
    %473 = vmatprep.subr.mxu0 0.0
    %474 = vmatpush2.msra.mxu0 0.0
    %475 = vmatprep.subr.mxu0 0.0
    %476 = vmatpush2.msra.mxu0 0.0
    %477 = vmatprep.subr.mxu0 0.0
    %478 = vmatpush2.msra.mxu0 0.0
    %479 = vmatprep.subr.mxu0 0.0
    %480 = vmatpush2.msra.mxu0 0.0
    %481 = vmatprep.subr.mxu0 0.0
    %482 = vmatpush2.msra.mxu0 0.0
    %483 = vmatprep.subr.mxu0 0.0
    %484 = vmatpush2.msra.mxu0 0.0
    %485 = vmatprep.subr.mxu0 0.0
    %486 = vmatpush2.msra.mxu0 0.0
    %487 = vmatprep.subr.mxu0 0.0
    %488 = vmatpush2.msra.mxu0 0.0
    %489 = vmatprep.subr.mxu0 0.0
    %490 = vmatpush2.msra.mxu0 0.0
    %491 = vmatprep.mubr.f32.mxu0 0.0
    %492 = vmatmul.mubr.f32.gmra.mxu0 %v212
    %v493 = vpop.f32.mrf.mxu0
    %v494 = vadd.f32 %v423, %v493
    %v495 = vpop.f32.mrf.mxu0
    %v496 = vadd.f32 %v425, %v495
    %497 = vdwg.mxu0
    %v498 = vmax.f32 %v352, 0.0
    %v499 = vmax.f32 %v354, 0.0
    %v500 = vmax.f32 %v494, 0.0
    %v501 = vmax.f32 %v496, 0.0
    %v502 = vld [vmem:[%s3] sm:$0xff]
    %v503 = vld [vmem:[%s3 + $0x8] sm:$0xff]
    %v504 = vld [vmem:[%s3 + $0x10] sm:$0xff]
    %v505 = vld [vmem:[%s3 + $0x18] sm:$0xff]
    %v506 = vld [vmem:[%s3 + $0x20] sm:$0xff]
    %v507 = vld [vmem:[%s3 + $0x28] sm:$0xff]
    %v508 = vld [vmem:[%s3 + $0x30] sm:$0xff]
    %v509 = vld [vmem:[%s3 + $0x38] sm:$0xff]
    %v510 = vld [vmem:[%s3 + $0x40] sm:$0xff]
    %v511 = vld [vmem:[%s3 + $0x48] sm:$0xff]
    %v512 = vld [vmem:[%s3 + $0x50] sm:$0xff]
    %v513 = vld [vmem:[%s3 + $0x58] sm:$0xff]
    %v514 = vld [vmem:[%s3 + $0x60] sm:$0xff]
    %v515 = vld [vmem:[%s3 + $0x68] sm:$0xff]
    %v516 = vld [vmem:[%s3 + $0x70] sm:$0xff]
    %v517 = vld [vmem:[%s3 + $0x78] sm:$0xff]
    %v518 = vld [vmem:[%s3 + $0x80] sm:$0xff]
    %v519 = vld [vmem:[%s3 + $0x88] sm:$0xff]
    %v520 = vld [vmem:[%s3 + $0x90] sm:$0xff]
    %v521 = vld [vmem:[%s3 + $0x98] sm:$0xff]
    %v522 = vld [vmem:[%s3 + $0xa0] sm:$0xff]
    %v523 = vld [vmem:[%s3 + $0xa8] sm:$0xff]
    %v524 = vld [vmem:[%s3 + $0xb0] sm:$0xff]
    %v525 = vld [vmem:[%s3 + $0xb8] sm:$0xff]
    %v526 = vld [vmem:[%s3 + $0xc0] sm:$0xff]
    %v527 = vld [vmem:[%s3 + $0xc8] sm:$0xff]
    %v528 = vld [vmem:[%s3 + $0xd0] sm:$0xff]
    %v529 = vld [vmem:[%s3 + $0xd8] sm:$0xff]
    %v530 = vld [vmem:[%s3 + $0xe0] sm:$0xff]
    %v531 = vld [vmem:[%s3 + $0xe8] sm:$0xff]
    %v532 = vld [vmem:[%s3 + $0xf0] sm:$0xff]
    %v533 = vld [vmem:[%s3 + $0xf8] sm:$0xff]
    %v534 = vld [vmem:[%s3 + $0x100] sm:$0xff]
    %v535 = vld [vmem:[%s3 + $0x108] sm:$0xff]
    %v536 = vld [vmem:[%s3 + $0x110] sm:$0xff]
    %v537 = vld [vmem:[%s3 + $0x118] sm:$0xff]
    %v538 = vld [vmem:[%s3 + $0x120] sm:$0xff]
    %v539 = vld [vmem:[%s3 + $0x128] sm:$0xff]
    %v540 = vld [vmem:[%s3 + $0x130] sm:$0xff]
    %v541 = vld [vmem:[%s3 + $0x138] sm:$0xff]
    %v542 = vld [vmem:[%s3 + $0x140] sm:$0xff]
    %v543 = vld [vmem:[%s3 + $0x148] sm:$0xff]
    %v544 = vld [vmem:[%s3 + $0x150] sm:$0xff]
    %v545 = vld [vmem:[%s3 + $0x158] sm:$0xff]
    %v546 = vld [vmem:[%s3 + $0x160] sm:$0xff]
    %v547 = vld [vmem:[%s3 + $0x168] sm:$0xff]
    %v548 = vld [vmem:[%s3 + $0x170] sm:$0xff]
    %v549 = vld [vmem:[%s3 + $0x178] sm:$0xff]
    %v550 = vld [vmem:[%s3 + $0x180] sm:$0xff]
    %v551 = vld [vmem:[%s3 + $0x188] sm:$0xff]
    %v552 = vld [vmem:[%s3 + $0x190] sm:$0xff]
    %v553 = vld [vmem:[%s3 + $0x198] sm:$0xff]
    %v554 = vld [vmem:[%s3 + $0x1a0] sm:$0xff]
    %v555 = vld [vmem:[%s3 + $0x1a8] sm:$0xff]
    %v556 = vld [vmem:[%s3 + $0x1b0] sm:$0xff]
    %v557 = vld [vmem:[%s3 + $0x1b8] sm:$0xff]
    %v558 = vld [vmem:[%s3 + $0x1c0] sm:$0xff]
    %v559 = vld [vmem:[%s3 + $0x1c8] sm:$0xff]
    %v560 = vld [vmem:[%s3 + $0x1d0] sm:$0xff]
    %v561 = vld [vmem:[%s3 + $0x1d8] sm:$0xff]
    %v562 = vld [vmem:[%s3 + $0x1e0] sm:$0xff]
    %v563 = vld [vmem:[%s3 + $0x1e8] sm:$0xff]
    %v564 = vld [vmem:[%s3 + $0x1f0] sm:$0xff]
    %v565 = vld [vmem:[%s3 + $0x1f8] sm:$0xff]
    %v566 = vld [vmem:[%s4] sm:$0x1]
    %v568 = vlaneseq
    %v569 = vshrl.u32 %v568, 7
    %v570 = vsub.s32 0, %v569
    %v571 = vrot.slane %v566, %v570
    %573 = vmatprep.subr.mxu0 0.0
    %574 = vmatpush1.msra.mxu0 %v517
    %575 = vmatprep.subr.mxu0 0.0
    %576 = vmatpush1.msra.mxu0 %v516
    %577 = vmatprep.subr.mxu0 0.0
    %578 = vmatpush1.msra.mxu0 %v515
    %579 = vmatprep.subr.mxu0 0.0
    %580 = vmatpush1.msra.mxu0 %v514
    %581 = vmatprep.subr.mxu0 0.0
    %582 = vmatpush1.msra.mxu0 %v513
    %583 = vmatprep.subr.mxu0 0.0
    %584 = vmatpush1.msra.mxu0 %v512
    %585 = vmatprep.subr.mxu0 0.0
    %586 = vmatpush1.msra.mxu0 %v511
    %587 = vmatprep.subr.mxu0 0.0
    %588 = vmatpush1.msra.mxu0 %v510
    %589 = vmatprep.subr.mxu0 0.0
    %590 = vmatpush1.msra.mxu0 %v509
    %591 = vmatprep.subr.mxu0 0.0
    %592 = vmatpush1.msra.mxu0 %v508
    %593 = vmatprep.subr.mxu0 0.0
    %594 = vmatpush1.msra.mxu0 %v507
    %595 = vmatprep.subr.mxu0 0.0
    %596 = vmatpush1.msra.mxu0 %v506
    %597 = vmatprep.subr.mxu0 0.0
    %598 = vmatpush1.msra.mxu0 %v505
    %599 = vmatprep.subr.mxu0 0.0
    %600 = vmatpush1.msra.mxu0 %v504
    %601 = vmatprep.subr.mxu0 0.0
    %602 = vmatpush1.msra.mxu0 %v503
    %603 = vmatprep.subr.mxu0 0.0
    %604 = vmatpush1.msra.mxu0 %v502
    %605 = vmatprep.subr.mxu0 0.0
    %606 = vmatpush2.msra.mxu0 %v533
    %607 = vmatprep.subr.mxu0 0.0
    %608 = vmatpush2.msra.mxu0 %v532
    %609 = vmatprep.subr.mxu0 0.0
    %610 = vmatpush2.msra.mxu0 %v531
    %611 = vmatprep.subr.mxu0 0.0
    %612 = vmatpush2.msra.mxu0 %v530
    %613 = vmatprep.subr.mxu0 0.0
    %614 = vmatpush2.msra.mxu0 %v529
    %615 = vmatprep.subr.mxu0 0.0
    %616 = vmatpush2.msra.mxu0 %v528
    %617 = vmatprep.subr.mxu0 0.0
    %618 = vmatpush2.msra.mxu0 %v527
    %619 = vmatprep.subr.mxu0 0.0
    %620 = vmatpush2.msra.mxu0 %v526
    %621 = vmatprep.subr.mxu0 0.0
    %622 = vmatpush2.msra.mxu0 %v525
    %623 = vmatprep.subr.mxu0 0.0
    %624 = vmatpush2.msra.mxu0 %v524
    %625 = vmatprep.subr.mxu0 0.0
    %626 = vmatpush2.msra.mxu0 %v523
    %627 = vmatprep.subr.mxu0 0.0
    %628 = vmatpush2.msra.mxu0 %v522
    %629 = vmatprep.subr.mxu0 0.0
    %630 = vmatpush2.msra.mxu0 %v521
    %631 = vmatprep.subr.mxu0 0.0
    %632 = vmatpush2.msra.mxu0 %v520
    %633 = vmatprep.subr.mxu0 0.0
    %634 = vmatpush2.msra.mxu0 %v519
    %635 = vmatprep.subr.mxu0 0.0
    %636 = vmatpush2.msra.mxu0 %v518
    %637 = vmatprep.mubr.f32.mxu0 %v499
    %638 = vmatmul.mubr.f32.gmra.mxu0 %v498
    %v639 = vpop.f32.mrf.mxu0
    %v640 = vadd.f32 %v571, %v639
    %v641 = vpop.f32.mrf.mxu0
    %642 = vdwg.mxu0
    %643 = vmatprep.subr.mxu0 0.0
    %644 = vmatpush1.msra.mxu0 %v549
    %645 = vmatprep.subr.mxu0 0.0
    %646 = vmatpush1.msra.mxu0 %v548
    %647 = vmatprep.subr.mxu0 0.0
    %648 = vmatpush1.msra.mxu0 %v547
    %649 = vmatprep.subr.mxu0 0.0
    %650 = vmatpush1.msra.mxu0 %v546
    %651 = vmatprep.subr.mxu0 0.0
    %652 = vmatpush1.msra.mxu0 %v545
    %653 = vmatprep.subr.mxu0 0.0
    %654 = vmatpush1.msra.mxu0 %v544
    %655 = vmatprep.subr.mxu0 0.0
    %656 = vmatpush1.msra.mxu0 %v543
    %657 = vmatprep.subr.mxu0 0.0
    %658 = vmatpush1.msra.mxu0 %v542
    %659 = vmatprep.subr.mxu0 0.0
    %660 = vmatpush1.msra.mxu0 %v541
    %661 = vmatprep.subr.mxu0 0.0
    %662 = vmatpush1.msra.mxu0 %v540
    %663 = vmatprep.subr.mxu0 0.0
    %664 = vmatpush1.msra.mxu0 %v539
    %665 = vmatprep.subr.mxu0 0.0
    %666 = vmatpush1.msra.mxu0 %v538
    %667 = vmatprep.subr.mxu0 0.0
    %668 = vmatpush1.msra.mxu0 %v537
    %669 = vmatprep.subr.mxu0 0.0
    %670 = vmatpush1.msra.mxu0 %v536
    %671 = vmatprep.subr.mxu0 0.0
    %672 = vmatpush1.msra.mxu0 %v535
    %673 = vmatprep.subr.mxu0 0.0
    %674 = vmatpush1.msra.mxu0 %v534
    %675 = vmatprep.subr.mxu0 0.0
    %676 = vmatpush2.msra.mxu0 %v565
    %677 = vmatprep.subr.mxu0 0.0
    %678 = vmatpush2.msra.mxu0 %v564
    %679 = vmatprep.subr.mxu0 0.0
    %680 = vmatpush2.msra.mxu0 %v563
    %681 = vmatprep.subr.mxu0 0.0
    %682 = vmatpush2.msra.mxu0 %v562
    %683 = vmatprep.subr.mxu0 0.0
    %684 = vmatpush2.msra.mxu0 %v561
    %685 = vmatprep.subr.mxu0 0.0
    %686 = vmatpush2.msra.mxu0 %v560
    %687 = vmatprep.subr.mxu0 0.0
    %688 = vmatpush2.msra.mxu0 %v559
    %689 = vmatprep.subr.mxu0 0.0
    %690 = vmatpush2.msra.mxu0 %v558
    %691 = vmatprep.subr.mxu0 0.0
    %692 = vmatpush2.msra.mxu0 %v557
    %693 = vmatprep.subr.mxu0 0.0
    %694 = vmatpush2.msra.mxu0 %v556
    %695 = vmatprep.subr.mxu0 0.0
    %696 = vmatpush2.msra.mxu0 %v555
    %697 = vmatprep.subr.mxu0 0.0
    %698 = vmatpush2.msra.mxu0 %v554
    %699 = vmatprep.subr.mxu0 0.0
    %700 = vmatpush2.msra.mxu0 %v553
    %701 = vmatprep.subr.mxu0 0.0
    %702 = vmatpush2.msra.mxu0 %v552
    %703 = vmatprep.subr.mxu0 0.0
    %704 = vmatpush2.msra.mxu0 %v551
    %705 = vmatprep.subr.mxu0 0.0
    %706 = vmatpush2.msra.mxu0 %v550
    %707 = vmatprep.mubr.f32.mxu0 %v501
    %708 = vmatmul.mubr.f32.gmra.mxu0 %v500
    %v709 = vpop.f32.mrf.mxu0
    %v710 = vadd.f32 %v640, %v709
    %v711 = vpop.f32.mrf.mxu0
    %712 = vdwg.mxu0
    %v713 = vmax.f32 %v710, 0.0
    %v714 = vld [vmem:[%s5] sm:$0xff]
    %v715 = vld [vmem:[%s5 + $0x8] sm:$0xff]
    %v716 = vld [vmem:[%s5 + $0x10] sm:$0xff]
    %v717 = vld [vmem:[%s5 + $0x18] sm:$0xff]
    %v718 = vld [vmem:[%s5 + $0x20] sm:$0xff]
    %v719 = vld [vmem:[%s5 + $0x28] sm:$0xff]
    %v720 = vld [vmem:[%s5 + $0x30] sm:$0xff]
    %v721 = vld [vmem:[%s5 + $0x38] sm:$0xff]
    %v722 = vld [vmem:[%s6] sm:$0x1]
    %v724 = vlaneseq
    %v725 = vshrl.u32 %v724, 7
    %v726 = vsub.s32 0, %v725
    %v727 = vrot.slane %v722, %v726
    %vm729 = vcmask 523264
    %v731 = vsel %vm729, %v713, 0
    %733 = vmatprep.subr.mxu0 0.0
    %734 = vmatpush1.msra.mxu0 0.0
    %735 = vmatprep.subr.mxu0 0.0
    %736 = vmatpush1.msra.mxu0 0.0
    %737 = vmatprep.subr.mxu0 0.0
    %738 = vmatpush1.msra.mxu0 0.0
    %739 = vmatprep.subr.mxu0 0.0
    %740 = vmatpush1.msra.mxu0 0.0
    %741 = vmatprep.subr.mxu0 0.0
    %742 = vmatpush1.msra.mxu0 0.0
    %743 = vmatprep.subr.mxu0 0.0
    %744 = vmatpush1.msra.mxu0 0.0
    %745 = vmatprep.subr.mxu0 0.0
    %746 = vmatpush1.msra.mxu0 0.0
    %747 = vmatprep.subr.mxu0 0.0
    %748 = vmatpush1.msra.mxu0 0.0
    %749 = vmatprep.subr.mxu0 0.0
    %750 = vmatpush1.msra.mxu0 %v721
    %751 = vmatprep.subr.mxu0 0.0
    %752 = vmatpush1.msra.mxu0 %v720
    %753 = vmatprep.subr.mxu0 0.0
    %754 = vmatpush1.msra.mxu0 %v719
    %755 = vmatprep.subr.mxu0 0.0
    %756 = vmatpush1.msra.mxu0 %v718
    %757 = vmatprep.subr.mxu0 0.0
    %758 = vmatpush1.msra.mxu0 %v717
    %759 = vmatprep.subr.mxu0 0.0
    %760 = vmatpush1.msra.mxu0 %v716
    %761 = vmatprep.subr.mxu0 0.0
    %762 = vmatpush1.msra.mxu0 %v715
    %763 = vmatprep.subr.mxu0 0.0
    %764 = vmatpush1.msra.mxu0 %v714
    %765 = vmatprep.subr.mxu0 0.0
    %766 = vmatpush2.msra.mxu0 0.0
    %767 = vmatprep.subr.mxu0 0.0
    %768 = vmatpush2.msra.mxu0 0.0
    %769 = vmatprep.subr.mxu0 0.0
    %770 = vmatpush2.msra.mxu0 0.0
    %771 = vmatprep.subr.mxu0 0.0
    %772 = vmatpush2.msra.mxu0 0.0
    %773 = vmatprep.subr.mxu0 0.0
    %774 = vmatpush2.msra.mxu0 0.0
    %775 = vmatprep.subr.mxu0 0.0
    %776 = vmatpush2.msra.mxu0 0.0
    %777 = vmatprep.subr.mxu0 0.0
    %778 = vmatpush2.msra.mxu0 0.0
    %779 = vmatprep.subr.mxu0 0.0
    %780 = vmatpush2.msra.mxu0 0.0
    %781 = vmatprep.subr.mxu0 0.0
    %782 = vmatpush2.msra.mxu0 0.0
    %783 = vmatprep.subr.mxu0 0.0
    %784 = vmatpush2.msra.mxu0 0.0
    %785 = vmatprep.subr.mxu0 0.0
    %786 = vmatpush2.msra.mxu0 0.0
    %787 = vmatprep.subr.mxu0 0.0
    %788 = vmatpush2.msra.mxu0 0.0
    %789 = vmatprep.subr.mxu0 0.0
    %790 = vmatpush2.msra.mxu0 0.0
    %791 = vmatprep.subr.mxu0 0.0
    %792 = vmatpush2.msra.mxu0 0.0
    %793 = vmatprep.subr.mxu0 0.0
    %794 = vmatpush2.msra.mxu0 0.0
    %795 = vmatprep.subr.mxu0 0.0
    %796 = vmatpush2.msra.mxu0 0.0
    %797 = vmatprep.mubr.f32.mxu0 0.0
    %798 = vmatmul.mubr.f32.gmra.mxu0 %v731
    %v799 = vpop.f32.mrf.mxu0
    %v800 = vadd.f32 %v727, %v799
    %v801 = vpop.f32.mrf.mxu0
    %802 = vdwg.mxu0
    %803 = vmax.xlane.f32.xlu0 %v800
    %v804 = vpop.xlane.xlu0 %803
    %v805 = vsub.f32 %v800, %v804
    %v806 = vmul.f32 %v805, 1.442695
    %v807 = vpow.pop %v806
    %808 = vadd.xlane.f32.xlu0 %v807
    %v809 = vpop.xlane.xlu0 %808
    %v810 = vrcp.pop %v809
    %v811 = vmul.f32 %v807, %v810
    %812 = vst [vmem:[#allocation5] sm:$0xff] %v811
    // Predicated region
    $region34: #{tpu_custom_call.1} parent=1 // pred_check
      _
    $region35: #{tpu_custom_call.1} parent=1 // pred_check_branch
      %814 = sbr.rel (0) target = $region37
    $region36: #{tpu_custom_call.1} parent=1 // pred_region
      %s816 = ssub.s32 128, 128
      %817 = vsyncadd [#allocation4], %s816
      %s819 = sshll.u32 [#allocation5], 4
      %s820 = int_to_ptr.vmem [resolvable:$true] %s819
      %822 = dma.vmem_to_hbm [thread:$0]  %s820, 128, %s7, [#allocation4]
    $region37: #{tpu_custom_call.1} parent=1 // pred_fallthru
      _
    // Predicated region
    $region38: #{tpu_custom_call.1} parent=1 // pred_check
      _
    $region39: #{tpu_custom_call.1} parent=1 // pred_check_branch
      %824 = sbr.rel (0) target = $region41
    $region40: #{tpu_custom_call.1} parent=1 // pred_region
      %825 = dma.done [#allocation4], 128
    $region41: #{tpu_custom_call.1} parent=1 // pred_fallthru
      _
    %826 = vsyncpa [#allocation3], 1
    %827 = vsyncpa [#allocation4], 1

</llo_original>
